<compile_context>
chip_gen: v7x
topology: tpu7x:2x2x1
jax: 0.10.0
libtpu: 0.0.40
codegen_flags: <defaults>
</compile_context>

<pallas_src>
import functools

import jax
import jax.numpy as jnp
from jax import lax
from jax.experimental import pallas as pl
from jax.experimental.pallas import tpu as pltpu

LANE = 128            # TPU lane width (last dim of every block)
SUBLANE = 8           # f32 sublane count of one vreg tile
MAX_BLOCK_ROWS = 8192  # 8192 x 128 x 4 B = 4 MiB f32 per input block


def _tensorcores_per_chip():
    """Best-effort TensorCore count per chip (v7x / megacore parts -> 2)."""
    try:
        info = pltpu.get_tpu_info()
        for attr in ("num_cores", "core_count", "num_tensorcores"):
            v = getattr(info, attr, None)
            if isinstance(v, int) and v >= 1:
                return v
    except Exception:
        pass
    try:
        kind = str(getattr(jax.devices()[0], "device_kind", "")).lower()
    except Exception:
        return 1
    if any(tag in kind for tag in ("v7", "7x", "v4", "v5p")):
        return 2
    return 1


def _focal_sum_kernel(x_ref, t_ref, out_ref, *, gamma, block_rows, nb, tail,
                      needs_mask, binary_targets):
    """Accumulate per-lane partial sums of the focal loss into a resident
    (8, LANE) f32 output block (one block per parallel chunk)."""

    @pl.when(pl.program_id(1) == 0)
    def _():
        out_ref[...] = jnp.zeros_like(out_ref)

    x = x_ref[...].astype(jnp.float32)
    t = t_ref[...].astype(jnp.float32)

    # Stable BCE-with-logits.  Algebraically identical (for ANY t) to the
    # reference  x - x*t + max_val + log(exp(-max_val) + exp(-x - max_val)):
    #   bce = (1 - t) * x - log_sigmoid(x)
    ls_p = jax.nn.log_sigmoid(x)          # exp + log on the EUP
    bce = (1.0 - t) * x - ls_p

    if binary_targets:
        # Exact for t in {0, 1}:  log_sigmoid(-x*(2t-1)) == log_sigmoid(x) - t*x.
        invprobs = ls_p - t * x
    else:
        # Exact reference form for arbitrary (soft) targets.
        invprobs = jax.nn.log_sigmoid(-x * (t * 2.0 - 1.0))

    focal = jnp.exp(invprobs * gamma) * bce

    def _block_sum(v):
        # (8,128)-tile-preserving reshape; axis-0 sum is pure VALU accumulation.
        return jnp.sum(v.reshape(block_rows // SUBLANE, SUBLANE, LANE), axis=0)

    if not needs_mask:
        out_ref[...] += _block_sum(focal)
    else:
        lb = pl.program_id(0) * pl.num_programs(1) + pl.program_id(1)

        @pl.when(lb < nb - 1)
        def _():
            # Interior blocks: fully valid, unmasked accumulate.
            out_ref[...] += _block_sum(focal)

        @pl.when(lb >= nb - 1)
        def _():
            # Last real block (mask padding / ragged tail) and clamped dead
            # steps (mask everything).  Block-local index, so no 2^31 limit.
            remaining = jnp.where(lb == nb - 1, tail, 0)
            r = lax.broadcasted_iota(jnp.int32, (block_rows, LANE), 0)
            c = lax.broadcasted_iota(jnp.int32, (block_rows, LANE), 1)
            masked = jnp.where(r * LANE + c < remaining, focal, 0.0)
            out_ref[...] += _block_sum(masked)


def focal_loss_pallas(x, target, gamma, *, binary_targets=False):
    """FocalLoss(gamma).forward(x, target) -> scalar mean focal loss.

    Set binary_targets=True only when target values are in {0, 1}; it enables
    a faster (still exact for binary targets) transcendental path.
    """
    if x.shape != target.shape:
        raise ValueError(
            "Target size ({}) must be the same as input size ({})".format(
                target.shape, x.shape))

    n = int(x.size)
    xf = x.reshape(-1)
    tf = target.reshape(-1)

    # Pad the flat stream to a multiple of one (8,128) vreg tile (<= 1023
    # elements) so every block takes the tile-preserving reduction path.
    pad = (-n) % (SUBLANE * LANE)
    if pad:
        xf = jnp.pad(xf, (0, pad))
        tf = jnp.pad(tf, (0, pad))
    rows = (n + pad) // LANE            # always a multiple of 8

    x2 = xf.reshape(rows, LANE)
    t2 = tf.reshape(rows, LANE)

    # Block rows: one full-array block for small inputs, else 8192-row blocks.
    tr = rows if rows <= MAX_BLOCK_ROWS else MAX_BLOCK_ROWS
    nb = pl.cdiv(rows, tr)              # total real row-blocks
    P = 2 if (nb >= 2 and _tensorcores_per_chip() >= 2) else 1
    spc = pl.cdiv(nb, P)                # sequential steps per parallel chunk

    # Valid elements in the last real block (compile-time constant, < 2^21).
    tail = n - (nb - 1) * tr * LANE
    needs_mask = (pad != 0) or (nb * tr != rows) or (P * spc != nb)

    def in_map(p, s):
        # Clamp so fully-out-of-range steps re-read the last real block; their
        # contribution is zeroed by the last-block mask branch.
        return (jnp.minimum(p * spc + s, nb - 1), 0)

    kernel = functools.partial(
        _focal_sum_kernel, gamma=float(gamma), block_rows=tr, nb=nb, tail=tail,
        needs_mask=needs_mask, binary_targets=binary_targets)

    bytes_accessed = (n * (x.dtype.itemsize + target.dtype.itemsize)
                      + P * SUBLANE * LANE * 4)
    cost = pl.CostEstimate(
        flops=10 * n,
        transcendentals=(3 if binary_targets else 5) * n,
        bytes_accessed=bytes_accessed)

    # NOTE: per-lane f32 running sums across all sequential steps; fine for
    # typical sizes (block partials are already tree-reduced over sublanes).
    partials = pl.pallas_call(
        kernel,
        out_shape=jax.ShapeDtypeStruct((P * SUBLANE, LANE), jnp.float32),
        grid_spec=pltpu.PrefetchScalarGridSpec(
            num_scalar_prefetch=0,
            grid=(P, spc),
            in_specs=[
                pl.BlockSpec((tr, LANE), in_map),
                pl.BlockSpec((tr, LANE), in_map),
            ],
            out_specs=pl.BlockSpec((SUBLANE, LANE), lambda p, s: (p, 0)),
        ),
        compiler_params=pltpu.CompilerParams(
            dimension_semantics=("parallel", "arbitrary"),
            vmem_limit_bytes=32 * 1024 * 1024,
        ),
        cost_estimate=cost,
    )(x2, t2)

    return jnp.sum(partials) / n


def focal_loss_ref(x, target, gamma):
    """Pure-JAX reference mirroring the PyTorch FocalLoss module exactly."""
    x = x.astype(jnp.float32)
    t = target.astype(jnp.float32)
    max_val = jnp.maximum(-x, 0.0)
    loss = x - x * t + max_val + jnp.log(jnp.exp(-max_val) + jnp.exp(-x - max_val))
    invprobs = jax.nn.log_sigmoid(-x * (t * 2.0 - 1.0))
    return jnp.mean(jnp.exp(invprobs * gamma) * loss)


if __name__ == "__main__":
    key = jax.random.PRNGKey(0)
    k1, k2, k3, k4, k5 = jax.random.split(key, 5)

    gamma = 2.0  # FocalLoss hyperparameter

    # input: logits (N, C, H, W); target: binary mask of the same shape.
    shape = (2, 4, 16, 16)
    x = jax.random.normal(k1, shape, dtype=jnp.float32)
    # Keep the target HBM stream narrow: bf16 represents {0,1} exactly.
    target = jax.random.bernoulli(k2, p=0.3, shape=shape).astype(jnp.bfloat16)

    out = jax.block_until_ready(
        focal_loss_pallas(x, target, gamma, binary_targets=True))
    ref = focal_loss_ref(x, target, gamma)
    assert jnp.allclose(out, ref, rtol=1e-5, atol=1e-6), (out, ref)

    # Non-binary (soft) targets use the exact reference formulation.
    soft_t = jax.random.uniform(k3, shape, dtype=jnp.float32)
    out2 = jax.block_until_ready(focal_loss_pallas(x, soft_t, gamma))
    ref2 = focal_loss_ref(x, soft_t, gamma)
    assert jnp.allclose(out2, ref2, rtol=1e-5, atol=1e-6), (out2, ref2)

    # Ragged shape exercises the last-block padding-mask branch.
    rshape = (2, 3, 10, 10)
    xr = jax.random.normal(k4, rshape, dtype=jnp.float32)
    tr_ = jax.random.bernoulli(k5, p=0.5, shape=rshape).astype(jnp.bfloat16)
    out3 = jax.block_until_ready(
        focal_loss_pallas(xr, tr_, gamma, binary_targets=True))
    ref3 = focal_loss_ref(xr, tr_, gamma)
    assert jnp.allclose(out3, ref3, rtol=1e-5, atol=1e-6), (out3, ref3)

    print("KERNEL_OK")
</pallas_src>

<mosaic_0001>
module attributes {stable_mosaic.version = 11 : i64} {
  func.func @_focal_sum_kernel(%arg0: i32, %arg1: i32, %arg2: memref<16x128xf32, #tpu.memory_space<vmem>>, %arg3: memref<16x128xbf16, #tpu.memory_space<vmem>>, %arg4: memref<8x128xf32, #tpu.memory_space<vmem>>) attributes {dimension_semantics = [#tpu.dimension_semantics<parallel>, #tpu.dimension_semantics<arbitrary>], iteration_bounds = array<i64: 1, 1>, scalar_prefetch = 0 : i64, scratch_operands = 0 : i64, tpu.core_type = #tpu.core_type<tc>, window_params = [{transform_indices = @transform_0, window_bounds = array<i64: 16, 128>}, {transform_indices = @transform_1, window_bounds = array<i64: 16, 128>}, {transform_indices = @transform_2, window_bounds = array<i64: 8, 128>}]} {
    %c0_i32 = arith.constant 0 : i32
    %0 = arith.cmpi eq, %arg1, %c0_i32 : i32
    %1 = arith.extui %0 : i1 to i32
    %c0_i32_0 = arith.constant 0 : i32
    %2 = arith.cmpi ne, %1, %c0_i32_0 : i32
    scf.if %2 {
      %cst_14 = arith.constant 0.000000e+00 : f32
      %39 = vector.broadcast %cst_14 : f32 to vector<8x128xf32>
      %c0_15 = arith.constant 0 : index
      %c0_16 = arith.constant 0 : index
      %40 = vector.load %arg4[%c0_15, %c0_16] : memref<8x128xf32, #tpu.memory_space<vmem>>, vector<8x128xf32>
      tpu.vector_store %arg4[%c0_15, %c0_16], %39 {strides = array<i32>} : memref<8x128xf32, #tpu.memory_space<vmem>>, vector<8x128xf32>,
    } else {
    }
    %c0 = arith.constant 0 : index
    %c0_1 = arith.constant 0 : index
    %3 = vector.load %arg2[%c0, %c0_1] : memref<16x128xf32, #tpu.memory_space<vmem>>, vector<16x128xf32>
    %c0_2 = arith.constant 0 : index
    %c0_3 = arith.constant 0 : index
    %4 = vector.load %arg3[%c0_2, %c0_3] : memref<16x128xbf16, #tpu.memory_space<vmem>>, vector<16x128xbf16>
    %5 = arith.extf %4 : vector<16x128xbf16> to vector<16x128xf32>
    %cst = arith.constant 0.000000e+00 : f32
    %6 = vector.broadcast %cst : f32 to vector<16x128xf32>
    %7 = arith.subf %6, %3 : vector<16x128xf32>
    %cst_4 = arith.constant 0.000000e+00 : f32
    %8 = vector.broadcast %cst_4 : f32 to vector<16x128xf32>
    %9 = arith.maximumf %7, %8 : vector<16x128xf32>
    %10 = vector.broadcast %cst_4 : f32 to vector<16x128xf32>
    %11 = arith.subf %7, %10 : vector<16x128xf32>
    %12 = arith.cmpf one, %11, %11 : vector<16x128xf32>
    %13 = vector.broadcast %cst_4 : f32 to vector<16x128xf32>
    %14 = arith.addf %7, %13 : vector<16x128xf32>
    %15 = math.absf %11 : vector<16x128xf32>
    %cst_5 = arith.constant 0.000000e+00 : f32
    %16 = vector.broadcast %cst_5 : f32 to vector<16x128xf32>
    %17 = arith.subf %16, %15 : vector<16x128xf32>
    %18 = math.exp %17 : vector<16x128xf32>
    %19 = math.log1p %18 : vector<16x128xf32>
    %20 = arith.addf %9, %19 : vector<16x128xf32>
    %21 = arith.select %12, %14, %20 : vector<16x128xi1>, vector<16x128xf32>
    %cst_6 = arith.constant 0.000000e+00 : f32
    %22 = vector.broadcast %cst_6 : f32 to vector<16x128xf32>
    %23 = arith.subf %22, %21 : vector<16x128xf32>
    %cst_7 = arith.constant 1.000000e+00 : f32
    %24 = vector.broadcast %cst_7 : f32 to vector<16x128xf32>
    %25 = arith.subf %24, %5 : vector<16x128xf32>
    %26 = arith.mulf %25, %3 : vector<16x128xf32>
    %27 = arith.subf %26, %23 : vector<16x128xf32>
    %28 = arith.mulf %5, %3 : vector<16x128xf32>
    %29 = arith.subf %23, %28 : vector<16x128xf32>
    %cst_8 = arith.constant 2.000000e+00 : f32
    %30 = vector.broadcast %cst_8 : f32 to vector<16x128xf32>
    %31 = arith.mulf %29, %30 : vector<16x128xf32>
    %32 = math.exp %31 : vector<16x128xf32>
    %33 = arith.mulf %32, %27 : vector<16x128xf32>
    %c0_9 = arith.constant 0 : index
    %c0_10 = arith.constant 0 : index
    %34 = vector.load %arg4[%c0_9, %c0_10] : memref<8x128xf32, #tpu.memory_space<vmem>>, vector<8x128xf32>
    %35 = vector.shape_cast %33 : vector<16x128xf32> to vector<2x8x128xf32>
    %cst_11 = arith.constant dense<0.000000e+00> : vector<8x128xf32>
    %36 = vector.multi_reduction <add>, %35, %cst_11 [0] : vector<2x8x128xf32> to vector<8x128xf32>
    %37 = arith.addf %34, %36 : vector<8x128xf32>
    %c0_12 = arith.constant 0 : index
    %c0_13 = arith.constant 0 : index
    %38 = vector.load %arg4[%c0_12, %c0_13] : memref<8x128xf32, #tpu.memory_space<vmem>>, vector<8x128xf32>
    tpu.vector_store %arg4[%c0_12, %c0_13], %37 {strides = array<i32>} : memref<8x128xf32, #tpu.memory_space<vmem>>, vector<8x128xf32>,
    return
  }
  func.func @transform_0(%arg0: i32, %arg1: i32) -> (i32, i32) {
    %c1_i32 = arith.constant 1 : i32
    %0 = arith.muli %arg0, %c1_i32 : i32
    %1 = arith.addi %0, %arg1 : i32
    %c0_i32 = arith.constant 0 : i32
    %2 = arith.minsi %1, %c0_i32 : i32
    %c0_i32_0 = arith.constant 0 : i32
    %c0_i32_1 = arith.constant 0 : i32
    return %2, %c0_i32_0 : i32, i32
  }
  func.func @transform_1(%arg0: i32, %arg1: i32) -> (i32, i32) {
    %c1_i32 = arith.constant 1 : i32
    %0 = arith.muli %arg0, %c1_i32 : i32
    %1 = arith.addi %0, %arg1 : i32
    %c0_i32 = arith.constant 0 : i32
    %2 = arith.minsi %1, %c0_i32 : i32
    %c0_i32_0 = arith.constant 0 : i32
    %c0_i32_1 = arith.constant 0 : i32
    return %2, %c0_i32_0 : i32, i32
  }
  func.func @transform_2(%arg0: i32, %arg1: i32) -> (i32, i32) {
    %c0_i32 = arith.constant 0 : i32
    %c0_i32_0 = arith.constant 0 : i32
    return %arg0, %c0_i32 : i32, i32
  }
}

</mosaic_0001>

<llo_original>
// kernel: tpu_custom_call.1
$region0: #{tpu_custom_call.1}
  #allocation0 [shape = 'u32[]', space=smem, size = 0x4, offset = 0x4, fixed_abs, tag = 'smem constant byte address 0x4 - core index']
  #allocation1 [shape = 'u32[144,128]{1,0:T(1,128)}', space=vmem, size = 0x12000, scoped, tag = 'internal scratch']
  %s0 = inlined_call_operand.hbm [shape: f32[16,128], index: 0, kind: input, shape index: {}]
  %s1 = inlined_call_operand.hbm [shape: bf16[16,128], index: 1, kind: input, shape index: {}]
  %s2 = inlined_call_operand.hbm [shape: f32[8,128], index: 2, kind: output, shape index: {}]
  %s3 = sld [smem:[#allocation0]]
  $region30: #{tpu_custom_call.1} parent=0
    _
  %s5 = ssub.s32 1, %s3
  %s6 = scalar_select 0, %s5, %s3
  $region1: #{tpu_custom_call.1} parent=0
    #allocation2 [shape = 'u8[8192]{0}', space=vmem, size = 0x2000, scoped, tag = 'input window, operand 0, single buffered']
    #allocation3 [shape = 's32[1]{0}', space=sflag, size = 0x4, scoped, tag = 'scoped memory for tpu_custom_call.1']
    #allocation4 [shape = 's32[1]{0}', space=sflag, size = 0x4, scoped, tag = 'scoped memory for tpu_custom_call.1']
    #allocation5 [shape = 'u8[4096]{0}', space=vmem, size = 0x1000, scoped, tag = 'input window, operand 1, single buffered']
    #allocation6 [shape = 's32[1]{0}', space=sflag, size = 0x4, scoped, tag = 'scoped memory for tpu_custom_call.1']
    #allocation7 [shape = 'u8[4096]{0}', space=vmem, size = 0x1000, scoped, tag = 'output window, operand 0, single buffered']
    %7 = vsyncpa [#allocation3], 0
    %8 = vsyncpa [#allocation6], 0
    %9 = vsyncpa [#allocation4], 0
    // Predicated region
    $region2: #{tpu_custom_call.1} parent=1 // pred_check
      _
    $region3: #{tpu_custom_call.1} parent=1 // pred_check_branch
      %11 = sbr.rel (0) target = $region5
    $region4: #{tpu_custom_call.1} parent=1 // pred_region
      %s12 = sadd.s32 0, 0
      %p13 = scmp.lt.s32.totalorder %s12, 0
      %s14 = scalar_select %p13, %s12, 0
      %s15 = smul.u32 2, %s14
      %s17 = ssub.s32 256, 256
      %18 = vsyncadd [#allocation3], %s17
      %s19 = smul.addr %s15, 128
      %s20 = scalar_lea.hbm %s0, %s19
      %s21 = sshll.u32 [#allocation2], 4
      %s22 = int_to_ptr.vmem [resolvable:$true] %s21
      %27 = dma.hbm_to_vmem [thread:$0]  %s20, 256, %s22, [#allocation3], 128, 128, 8
    $region5: #{tpu_custom_call.1} parent=1 // pred_fallthru
      _
    // Predicated region
    $region6: #{tpu_custom_call.1} parent=1 // pred_check
      _
    $region7: #{tpu_custom_call.1} parent=1 // pred_check_branch
      %29 = sbr.rel (0) target = $region9
    $region8: #{tpu_custom_call.1} parent=1 // pred_region
      %s30 = sadd.s32 0, 0
      %p31 = scmp.lt.s32.totalorder %s30, 0
      %s32 = scalar_select %p31, %s30, 0
      %s33 = smul.u32 2, %s32
      %s35 = ssub.s32 128, 128
      %36 = vsyncadd [#allocation6], %s35
      %s37 = smul.addr %s33, 64
      %s38 = scalar_lea.hbm %s1, %s37
      %s39 = sshll.u32 [#allocation5], 4
      %s40 = int_to_ptr.vmem [resolvable:$true] %s39
      %45 = dma.hbm_to_vmem [thread:$0]  %s38, 128, %s40, [#allocation6], 64, 64, 4
    $region9: #{tpu_custom_call.1} parent=1 // pred_fallthru
      _
    // Predicated region
    $region10: #{tpu_custom_call.1} parent=1 // pred_check
      _
    $region11: #{tpu_custom_call.1} parent=1 // pred_check_branch
      %47 = sbr.rel (0) target = $region13
    $region12: #{tpu_custom_call.1} parent=1 // pred_region
      %48 = dma.done [#allocation3], 256
    $region13: #{tpu_custom_call.1} parent=1 // pred_fallthru
      _
    // Predicated region
    $region14: #{tpu_custom_call.1} parent=1 // pred_check
      _
    $region15: #{tpu_custom_call.1} parent=1 // pred_check_branch
      %50 = sbr.rel (0) target = $region17
    $region16: #{tpu_custom_call.1} parent=1 // pred_region
      %51 = dma.done [#allocation6], 128
    $region17: #{tpu_custom_call.1} parent=1 // pred_fallthru
      _
    %s52 = sadd.s32 0, 0
    %p53 = scmp.lt.s32.totalorder %s52, 0
    %s54 = scalar_select %p53, %s52, 0
    %s55 = smul.u32 2, %s54
    %s56 = sadd.s32 0, 0
    %p57 = scmp.lt.s32.totalorder %s56, 0
    %s58 = scalar_select %p57, %s56, 0
    %s59 = smul.u32 2, %s58
    %p60 = scmp.eq.s32.totalorder 0, 0
    // Predicated region
    $region18: #{tpu_custom_call.1} parent=1 // pred_check
      %p61 = pneg %p60
    $region19: #{tpu_custom_call.1} parent=1 // pred_check_branch
      %63 = sbr.rel (%p61) target = $region21
    $region20: #{tpu_custom_call.1} parent=1 // pred_region
      %64 = vst [vmem:[#allocation7] sm:$0xff] 0.0
    $region21: #{tpu_custom_call.1} parent=1 // pred_fallthru
      _
    %v65 = vld [vmem:[#allocation2] sm:$0xff]
    %v66 = vld [vmem:[#allocation2 + $0x8] sm:$0xff]
    %v67 = vld [vmem:[#allocation5] sm:$0xf]
    %v68 = vld [vmem:[#allocation5 + $0x4] sm:$0xf]
    %v69 = vunpack.c.l.bf16 %v67
    %v70 = vunpack.c.l.bf16 %v68
    %v71 = vsub.f32 0.0, %v65
    %v72 = vsub.f32 0.0, %v66
    %v73 = vmax.f32 %v71, 0.0
    %v74 = vmax.f32 %v72, 0.0
    %vm75 = vcmp.ne.f32.partialorder %v71, %v71
    %vm76 = vcmp.ne.f32.partialorder %v72, %v72
    %v77 = vadd.f32 %v71, 0.0
    %v78 = vadd.f32 %v72, 0.0
    %v79 = vand.u32 2147483647, %v71
    %v80 = vand.u32 2147483647, %v72
    %v81 = vsub.f32 0.0, %v79
    %v82 = vsub.f32 0.0, %v80
    %v83 = vmul.f32 %v81, 1.442695
    %v84 = vpow.pop %v83
    %v85 = vmul.f32 %v82, 1.442695
    %v86 = vpow.pop %v85
    %v87 = vadd.f32 %v84, 1.0
    %v88 = vlog2.pop %v87
    %v89 = vmul.f32 %v88, 0.6931472
    %v90 = vmul.f32 -0.5, %v84
    %v91 = vadd.f32 %v90, 1.0
    %v92 = vmul.f32 %v91, %v84
    %v93 = vand.u32 2147483647, %v84
    %vm94 = vcmp.lt.f32.partialorder %v93, 0.0004427343
    %v95 = vsel %vm94, %v92, %v89
    %v96 = vadd.f32 %v86, 1.0
    %v97 = vlog2.pop %v96
    %v98 = vmul.f32 %v97, 0.6931472
    %v99 = vmul.f32 -0.5, %v86
    %v100 = vadd.f32 %v99, 1.0
    %v101 = vmul.f32 %v100, %v86
    %v102 = vand.u32 2147483647, %v86
    %vm103 = vcmp.lt.f32.partialorder %v102, 0.0004427343
    %v104 = vsel %vm103, %v101, %v98
    %v105 = vadd.f32 %v73, %v95
    %v106 = vadd.f32 %v74, %v104
    %v107 = vsel %vm75, %v77, %v105
    %v108 = vsel %vm76, %v78, %v106
    %v109 = vsub.f32 0.0, %v107
    %v110 = vsub.f32 0.0, %v108
    %v111 = vsub.f32 1.0, %v69
    %v112 = vsub.f32 1.0, %v70
    %v113 = vmul.f32 %v111, %v65
    %v114 = vmul.f32 %v112, %v66
    %v115 = vsub.f32 %v113, %v109
    %v116 = vsub.f32 %v114, %v110
    %v117 = vmul.f32 %v69, %v65
    %v118 = vmul.f32 %v70, %v66
    %v119 = vsub.f32 %v109, %v117
    %v120 = vsub.f32 %v110, %v118
    %v121 = vmul.f32 %v119, 2.0
    %v122 = vmul.f32 %v120, 2.0
    %v123 = vmul.f32 %v121, 1.442695
    %v124 = vpow.pop %v123
    %v125 = vmul.f32 %v122, 1.442695
    %v126 = vpow.pop %v125
    %v127 = vmul.f32 %v124, %v115
    %v128 = vmul.f32 %v126, %v116
    %v129 = vld [vmem:[#allocation7] sm:$0xff]
    %v130 = vadd.f32 %v127, %v128
    %v131 = vadd.f32 %v129, %v130
    %132 = vst [vmem:[#allocation7] sm:$0xff] %v131
    // Predicated region
    $region22: #{tpu_custom_call.1} parent=1 // pred_check
      _
    $region23: #{tpu_custom_call.1} parent=1 // pred_check_branch
      %134 = sbr.rel (0) target = $region25
    $region24: #{tpu_custom_call.1} parent=1 // pred_region
      %s136 = ssub.s32 128, 128
      %137 = vsyncadd [#allocation4], %s136
      %s139 = sshll.u32 [#allocation7], 4
      %s140 = int_to_ptr.vmem [resolvable:$true] %s139
      %142 = dma.vmem_to_hbm [thread:$0]  %s140, 128, %s2, [#allocation4]
    $region25: #{tpu_custom_call.1} parent=1 // pred_fallthru
      _
    // Predicated region
    $region26: #{tpu_custom_call.1} parent=1 // pred_check
      _
    $region27: #{tpu_custom_call.1} parent=1 // pred_check_branch
      %144 = sbr.rel (0) target = $region29
    $region28: #{tpu_custom_call.1} parent=1 // pred_region
      %145 = dma.done [#allocation4], 128
    $region29: #{tpu_custom_call.1} parent=1 // pred_fallthru
      _
    %146 = vsyncpa [#allocation3], 1
    %147 = vsyncpa [#allocation6], 1
    %148 = vsyncpa [#allocation4], 1

</llo_original>
